<compile_context>
chip_gen: v5e
topology: v5e:2x2
jax: 0.10.0
libtpu: 0.0.40
codegen_flags: <defaults>
</compile_context>

<pallas_src>
import jax
import jax.numpy as jnp
from jax.experimental import pallas as pl
from jax.experimental.pallas import tpu as pltpu


def _masked_ce_kernel(logits_ref, labels_ref, sum_ref, cnt_ref):
    r = pl.program_id(1)

    @pl.when(r == 0)
    def _init():
        sum_ref[...] = jnp.zeros_like(sum_ref)
        cnt_ref[...] = jnp.zeros_like(cnt_ref)

    x = logits_ref[...].astype(jnp.float32)               # (TN, C) f32
    labels = labels_ref[...]                              # (TN, 1) int32; -1 = ignore

    # Numerically stable shifted logits, reused for both reductions.
    row_max = jnp.max(x, axis=-1, keepdims=True)          # (TN, 1)
    shifted = x - row_max                                  # (TN, C)
    sum_exp = jnp.sum(jnp.exp(shifted), axis=-1, keepdims=True)   # (TN, 1)

    # Target logit via one-hot compare; iota kept at (1, C) and broadcast.
    class_ids = jax.lax.broadcasted_iota(jnp.int32, (1, x.shape[-1]), 1)  # (1, C)
    tgt_shifted = jnp.sum(jnp.where(class_ids == labels, shifted, 0.0),
                          axis=-1, keepdims=True)          # (TN, 1)

    active = labels >= 0                                   # (TN, 1)
    nll = jnp.log(sum_exp) - tgt_shifted                   # = lse - tgt_logit

    # Per-step scalar reduce (cheap vs. the (TN, C) lane reductions above),
    # accumulated straight into the per-partial output blocks.
    sum_ref[...] += jnp.sum(jnp.where(active, nll, 0.0))
    cnt_ref[...] += jnp.sum(active.astype(jnp.float32))


def _round_up(x, m):
    return ((x + m - 1) // m) * m


def masked_ce_loss(outputs, targets, masks, *, tile_rows=None, num_partials=2,
                   vmem_budget_bytes=24 * 1024 * 1024, max_tile_rows=8192):
    """outputs: (..., C) float; targets/masks: (...) int.

    Matches nn.CrossEntropyLoss()(outputs.view(-1, C),
                                  where(masks.view(-1) == 1, targets, -100)).
    """
    C = outputs.shape[-1]
    logits = outputs.reshape(-1, C)          # keep native dtype (bf16 stays bf16 in HBM)
    N = logits.shape[0]

    # Fold mask into labels: -1 marks ignored / padded rows.
    labels = jnp.where(masks.reshape(-1) == 1,
                       targets.reshape(-1).astype(jnp.int32),
                       jnp.int32(-1)).reshape(N, 1)

    itemsize = jnp.dtype(logits.dtype).itemsize
    sublane_mult = 8 * max(1, 4 // itemsize)      # 8 for f32, 16 for bf16, 32 for int8

    # Per-row VMEM footprint: double-buffered logits DMA tile + in-kernel
    # temporaries (f32 upcast / exp / select, ~12 B per element) + the
    # double-buffered lane-padded (rows, 1) int32 label block.
    per_row_bytes = C * (2 * itemsize + 12) + 2 * 128 * 4

    if tile_rows is None:
        max_rows = max(sublane_mult, vmem_budget_bytes // per_row_bytes)
        tile_rows = min(max_tile_rows, max_rows)
    tile_rows = max(sublane_mult, (tile_rows // sublane_mult) * sublane_mult)
    tile_rows = min(tile_rows, _round_up(N, sublane_mult))

    # Pad rows to a (num_partials * tile_rows) multiple; padded rows carry
    # label -1 and are ignored.
    Np = _round_up(N, num_partials * tile_rows)
    pad = Np - N
    if pad:
        logits = jnp.pad(logits, ((0, pad), (0, 0)))
        labels = jnp.pad(labels, ((0, pad), (0, 0)), constant_values=-1)

    blocks_per_partial = Np // (num_partials * tile_rows)
    grid = (num_partials, blocks_per_partial)

    # Advisory cost for XLA's scheduler around the custom call.
    cost = pl.CostEstimate(
        flops=6 * Np * C,
        transcendentals=Np * C,
        bytes_accessed=Np * C * itemsize + Np * 4 + num_partials * 8,
    )

    # VMEM limit from the same per-row estimate plus headroom, capped well
    # under v7x's 64 MiB physical VMEM.
    needed = tile_rows * per_row_bytes + (4 << 20)
    vmem_limit = int(min(max(needed, 16 << 20), 44 << 20))
    # TODO(synk): for very large vocabularies (per_row_bytes * sublane_mult
    # exceeding the 44 MiB cap, C >~ 300k f32) add an inner class-chunk loop
    # with an online (flash-style) log-sum-exp so tile sizing decouples from C.

    def _row_block(p, r):
        return (p * blocks_per_partial + r, 0)

    loss_sum, count = pl.pallas_call(
        _masked_ce_kernel,
        out_shape=(
            jax.ShapeDtypeStruct((num_partials, 1, 1), jnp.float32),
            jax.ShapeDtypeStruct((num_partials, 1, 1), jnp.float32),
        ),
        grid_spec=pltpu.PrefetchScalarGridSpec(
            num_scalar_prefetch=0,
            grid=grid,
            in_specs=[
                pl.BlockSpec((tile_rows, C), _row_block),
                pl.BlockSpec((tile_rows, 1), _row_block),
            ],
            out_specs=[
                pl.BlockSpec((1, 1, 1), lambda p, r: (p, 0, 0)),
                pl.BlockSpec((1, 1, 1), lambda p, r: (p, 0, 0)),
            ],
        ),
        compiler_params=pltpu.CompilerParams(
            # Leading axis parallel (v7x megacore); row-block axis is the
            # reduction carried by the resident output block.
            dimension_semantics=("parallel", "arbitrary"),
            vmem_limit_bytes=vmem_limit,
        ),
        cost_estimate=cost,
    )(logits, labels)

    # Mean over active tokens (matches CrossEntropyLoss 'mean' with ignore_index).
    return jnp.sum(loss_sum) / jnp.sum(count)


def _reference(outputs, targets, masks):
    # Pure-JAX reference for sanity checking.
    C = outputs.shape[-1]
    logits = outputs.reshape(-1, C).astype(jnp.float32)
    labels = targets.reshape(-1)
    active = (masks.reshape(-1) == 1)
    logp = jax.nn.log_softmax(logits, axis=-1)
    nll = -jnp.take_along_axis(logp, labels[:, None], axis=-1)[:, 0]
    return jnp.sum(jnp.where(active, nll, 0.0)) / jnp.sum(active.astype(jnp.float32))


if __name__ == "__main__":
    key = jax.random.PRNGKey(0)

    # --- Small f32 check (shapes implied by the module: batch=2, seq=8, C=32) ---
    k1, k2, k3 = jax.random.split(key, 3)
    B, T, C = 2, 8, 32
    outputs = jax.random.normal(k1, (B, T, C), dtype=jnp.float32)
    targets = jax.random.randint(k2, (B, T), 0, C, dtype=jnp.int32)
    masks = (jax.random.uniform(k3, (B, T)) > 0.3).astype(jnp.int32)
    masks = masks.at[0, 0].set(1)   # guarantee at least one active token

    loss = jax.block_until_ready(masked_ce_loss(outputs, targets, masks))
    ref = _reference(outputs, targets, masks)
    assert jnp.allclose(loss, ref, rtol=1e-5, atol=1e-5), (loss, ref)

    # --- Larger bf16 check: exercises both partials + row padding ---
    k4, k5, k6 = jax.random.split(jax.random.PRNGKey(1), 3)
    B2, T2, C2 = 4, 300, 128
    outputs2 = jax.random.normal(k4, (B2, T2, C2), dtype=jnp.bfloat16)
    targets2 = jax.random.randint(k5, (B2, T2), 0, C2, dtype=jnp.int32)
    masks2 = (jax.random.uniform(k6, (B2, T2)) > 0.3).astype(jnp.int32)
    masks2 = masks2.at[0, 0].set(1)

    loss2 = jax.block_until_ready(masked_ce_loss(outputs2, targets2, masks2))
    ref2 = _reference(outputs2, targets2, masks2)
    assert jnp.allclose(loss2, ref2, rtol=1e-4, atol=1e-4), (loss2, ref2)

    # --- Multi-step accumulation check: small explicit tile forces several
    # row blocks per partial plus padded rows in the last block ---
    k7, k8, k9 = jax.random.split(jax.random.PRNGKey(2), 3)
    B3, T3, C3 = 2, 999, 64
    outputs3 = jax.random.normal(k7, (B3, T3, C3), dtype=jnp.float32)
    targets3 = jax.random.randint(k8, (B3, T3), 0, C3, dtype=jnp.int32)
    masks3 = (jax.random.uniform(k9, (B3, T3)) > 0.5).astype(jnp.int32)
    masks3 = masks3.at[0, 0].set(1)

    loss3 = jax.block_until_ready(
        masked_ce_loss(outputs3, targets3, masks3, tile_rows=128))
    ref3 = _reference(outputs3, targets3, masks3)
    assert jnp.allclose(loss3, ref3, rtol=1e-5, atol=1e-5), (loss3, ref3)

    print("KERNEL_OK")
</pallas_src>

<mosaic_0001>
module attributes {stable_mosaic.version = 11 : i64} {
  func.func @_masked_ce_kernel(%arg0: i32, %arg1: i32, %arg2: memref<16x32xf32, #tpu.memory_space<vmem>>, %arg3: memref<16x1xi32, #tpu.memory_space<vmem>>, %arg4: memref<1x1x1xf32, #tpu.memory_space<vmem>>, %arg5: memref<1x1x1xf32, #tpu.memory_space<vmem>>) attributes {dimension_semantics = [#tpu.dimension_semantics<parallel>, #tpu.dimension_semantics<arbitrary>], iteration_bounds = array<i64: 2, 1>, scalar_prefetch = 0 : i64, scratch_operands = 0 : i64, tpu.core_type = #tpu.core_type<tc>, window_params = [{transform_indices = @transform_0, window_bounds = array<i64: 16, 32>}, {transform_indices = @transform_1, window_bounds = array<i64: 16, 1>}, {transform_indices = @transform_2, window_bounds = array<i64: 1, 1, 1>}, {transform_indices = @transform_3, window_bounds = array<i64: 1, 1, 1>}]} {
    %c0_i32 = arith.constant 0 : i32
    %0 = arith.cmpi eq, %arg1, %c0_i32 : i32
    %1 = arith.extui %0 : i1 to i32
    %c0_i32_0 = arith.constant 0 : i32
    %2 = arith.cmpi ne, %1, %c0_i32_0 : i32
    scf.if %2 {
      %cst_23 = arith.constant 0.000000e+00 : f32
      %44 = vector.broadcast %cst_23 : f32 to vector<1x1x1xf32>
      %c0_24 = arith.constant 0 : index
      %c0_25 = arith.constant 0 : index
      %c0_26 = arith.constant 0 : index
      %45 = vector.load %arg4[%c0_24, %c0_25, %c0_26] : memref<1x1x1xf32, #tpu.memory_space<vmem>>, vector<1x1x1xf32>
      tpu.vector_store %arg4[%c0_24, %c0_25, %c0_26], %44 {strides = array<i32>} : memref<1x1x1xf32, #tpu.memory_space<vmem>>, vector<1x1x1xf32>,
      %cst_27 = arith.constant 0.000000e+00 : f32
      %46 = vector.broadcast %cst_27 : f32 to vector<1x1x1xf32>
      %c0_28 = arith.constant 0 : index
      %c0_29 = arith.constant 0 : index
      %c0_30 = arith.constant 0 : index
      %47 = vector.load %arg5[%c0_28, %c0_29, %c0_30] : memref<1x1x1xf32, #tpu.memory_space<vmem>>, vector<1x1x1xf32>
      tpu.vector_store %arg5[%c0_28, %c0_29, %c0_30], %46 {strides = array<i32>} : memref<1x1x1xf32, #tpu.memory_space<vmem>>, vector<1x1x1xf32>,
    } else {
    }
    %c0 = arith.constant 0 : index
    %c0_1 = arith.constant 0 : index
    %3 = vector.load %arg2[%c0, %c0_1] : memref<16x32xf32, #tpu.memory_space<vmem>>, vector<16x32xf32>
    %c0_2 = arith.constant 0 : index
    %c0_3 = arith.constant 0 : index
    %4 = vector.load %arg3[%c0_2, %c0_3] : memref<16x1xi32, #tpu.memory_space<vmem>>, vector<16x1xi32>
    %cst = arith.constant dense<0xFF800000> : vector<16xf32>
    %5 = vector.multi_reduction <maximumf>, %3, %cst [1] : vector<16x32xf32> to vector<16xf32>
    %6 = vector.shape_cast %5 : vector<16xf32> to vector<16x1xf32>
    %7 = vector.broadcast %6 : vector<16x1xf32> to vector<16x32xf32>
    %8 = arith.subf %3, %7 : vector<16x32xf32>
    %9 = math.exp %8 : vector<16x32xf32>
    %cst_4 = arith.constant dense<0.000000e+00> : vector<16xf32>
    %10 = vector.multi_reduction <add>, %9, %cst_4 [1] : vector<16x32xf32> to vector<16xf32>
    %11 = vector.shape_cast %10 : vector<16xf32> to vector<16x1xf32>
    %12 = tpu.iota {dimensions = array<i32: 1>} : vector<1x32xi32>
    %13 = vector.broadcast %12 : vector<1x32xi32> to vector<16x32xi32>
    %14 = vector.broadcast %4 : vector<16x1xi32> to vector<16x32xi32>
    %15 = arith.cmpi eq, %13, %14 : vector<16x32xi32>
    %cst_5 = arith.constant 0.000000e+00 : f32
    %16 = vector.broadcast %cst_5 : f32 to vector<16x32xf32>
    %17 = arith.select %15, %8, %16 : vector<16x32xi1>, vector<16x32xf32>
    %cst_6 = arith.constant dense<0.000000e+00> : vector<16xf32>
    %18 = vector.multi_reduction <add>, %17, %cst_6 [1] : vector<16x32xf32> to vector<16xf32>
    %19 = vector.shape_cast %18 : vector<16xf32> to vector<16x1xf32>
    %c0_i32_7 = arith.constant 0 : i32
    %20 = vector.broadcast %c0_i32_7 : i32 to vector<16x1xi32>
    %21 = arith.cmpi sge, %4, %20 : vector<16x1xi32>
    %22 = math.log %11 : vector<16x1xf32>
    %23 = arith.subf %22, %19 : vector<16x1xf32>
    %c0_8 = arith.constant 0 : index
    %c0_9 = arith.constant 0 : index
    %c0_10 = arith.constant 0 : index
    %24 = vector.load %arg4[%c0_8, %c0_9, %c0_10] : memref<1x1x1xf32, #tpu.memory_space<vmem>>, vector<1x1x1xf32>
    %cst_11 = arith.constant 0.000000e+00 : f32
    %25 = vector.broadcast %cst_11 : f32 to vector<16x1xf32>
    %26 = arith.select %21, %23, %25 : vector<16x1xi1>, vector<16x1xf32>
    %27 = vector.shape_cast %26 : vector<16x1xf32> to vector<1x16x1xf32>
    %cst_12 = arith.constant dense<0.000000e+00> : vector<1xf32>
    %28 = vector.multi_reduction <add>, %27, %cst_12 [1, 2] : vector<1x16x1xf32> to vector<1xf32>
    %29 = vector.shape_cast %28 : vector<1xf32> to vector<1x1x1xf32>
    %30 = vector.extract %29[0, 0, 0] : f32 from vector<1x1x1xf32>
    %31 = vector.broadcast %30 : f32 to vector<1x1x1xf32>
    %32 = arith.addf %24, %31 : vector<1x1x1xf32>
    %c0_13 = arith.constant 0 : index
    %c0_14 = arith.constant 0 : index
    %c0_15 = arith.constant 0 : index
    %33 = vector.load %arg4[%c0_13, %c0_14, %c0_15] : memref<1x1x1xf32, #tpu.memory_space<vmem>>, vector<1x1x1xf32>
    tpu.vector_store %arg4[%c0_13, %c0_14, %c0_15], %32 {strides = array<i32>} : memref<1x1x1xf32, #tpu.memory_space<vmem>>, vector<1x1x1xf32>,
    %c0_16 = arith.constant 0 : index
    %c0_17 = arith.constant 0 : index
    %c0_18 = arith.constant 0 : index
    %34 = vector.load %arg5[%c0_16, %c0_17, %c0_18] : memref<1x1x1xf32, #tpu.memory_space<vmem>>, vector<1x1x1xf32>
    %35 = arith.extui %21 : vector<16x1xi1> to vector<16x1xi32>
    %36 = arith.sitofp %35 : vector<16x1xi32> to vector<16x1xf32>
    %37 = vector.shape_cast %36 : vector<16x1xf32> to vector<1x16x1xf32>
    %cst_19 = arith.constant dense<0.000000e+00> : vector<1xf32>
    %38 = vector.multi_reduction <add>, %37, %cst_19 [1, 2] : vector<1x16x1xf32> to vector<1xf32>
    %39 = vector.shape_cast %38 : vector<1xf32> to vector<1x1x1xf32>
    %40 = vector.extract %39[0, 0, 0] : f32 from vector<1x1x1xf32>
    %41 = vector.broadcast %40 : f32 to vector<1x1x1xf32>
    %42 = arith.addf %34, %41 : vector<1x1x1xf32>
    %c0_20 = arith.constant 0 : index
    %c0_21 = arith.constant 0 : index
    %c0_22 = arith.constant 0 : index
    %43 = vector.load %arg5[%c0_20, %c0_21, %c0_22] : memref<1x1x1xf32, #tpu.memory_space<vmem>>, vector<1x1x1xf32>
    tpu.vector_store %arg5[%c0_20, %c0_21, %c0_22], %42 {strides = array<i32>} : memref<1x1x1xf32, #tpu.memory_space<vmem>>, vector<1x1x1xf32>,
    return
  }
  func.func @transform_0(%arg0: i32, %arg1: i32) -> (i32, i32) {
    %c1_i32 = arith.constant 1 : i32
    %0 = arith.muli %arg0, %c1_i32 : i32
    %1 = arith.addi %0, %arg1 : i32
    %c0_i32 = arith.constant 0 : i32
    %c0_i32_0 = arith.constant 0 : i32
    return %1, %c0_i32 : i32, i32
  }
  func.func @transform_1(%arg0: i32, %arg1: i32) -> (i32, i32) {
    %c1_i32 = arith.constant 1 : i32
    %0 = arith.muli %arg0, %c1_i32 : i32
    %1 = arith.addi %0, %arg1 : i32
    %c0_i32 = arith.constant 0 : i32
    %c0_i32_0 = arith.constant 0 : i32
    return %1, %c0_i32 : i32, i32
  }
  func.func @transform_2(%arg0: i32, %arg1: i32) -> (i32, i32, i32) {
    %c0_i32 = arith.constant 0 : i32
    %c0_i32_0 = arith.constant 0 : i32
    %c0_i32_1 = arith.constant 0 : i32
    return %arg0, %c0_i32, %c0_i32_0 : i32, i32, i32
  }
  func.func @transform_3(%arg0: i32, %arg1: i32) -> (i32, i32, i32) {
    %c0_i32 = arith.constant 0 : i32
    %c0_i32_0 = arith.constant 0 : i32
    %c0_i32_1 = arith.constant 0 : i32
    return %arg0, %c0_i32, %c0_i32_0 : i32, i32, i32
  }
}

</mosaic_0001>

<llo_original>
// kernel: tpu_custom_call.1
$region0: #{tpu_custom_call.1}
  #allocation0 [shape = 'u32[]', space=smem, size = 0x4, offset = 0x4, fixed_abs, tag = 'smem constant byte address 0x4 - core index']
  #allocation1 [shape = 'u32[72,128]{1,0:T(1,128)}', space=vmem, size = 0x9000, scoped, tag = 'internal scratch']
  %s0 = inlined_call_operand.vmem [shape: f32[32,32], index: 0, kind: input, shape index: {}]
  %s1 = inlined_call_operand.vmem [shape: s32[32,1], index: 1, kind: input, shape index: {}]
  %s2 = inlined_call_operand.vmem [shape: f32[2,1,1], index: 2, kind: output, shape index: {0}]
  %s3 = inlined_call_operand.vmem [shape: f32[2,1,1], index: 3, kind: output, shape index: {1}]
  %4 = xla_tuple %s2, %s3
  %s5 = sld [smem:[#allocation0]]
  $region53: #{tpu_custom_call.1} parent=0
    _
  %s7 = ssub.s32 1, %s5
  %s8 = scalar_select 0, %s7, %s5
  loop: start=0, step=1, limit=4
  $region2: #{tpu_custom_call.1} parent=0 // loop_pre_header
    _
  $region3: #{tpu_custom_call.1} parent=0 // loop_header
    %s10 = sphi 0, %s14
    %p11 = scmp.ge.s32.totalorder %s10, 4
    %s17 = sphi 0, %s29
    %s18 = sphi 0, %s25
    %s19 = sphi 0, %s17
    %s20 = sphi 0, %s18
    %s21 = sphi 0, %s19
    %s22 = sphi 0, %s20
    %s34 = sphi 0, %s36
    %s37 = sphi 0, %s34
    %s38 = sphi 0, %s37
    %s54 = sphi 0, %s38
    %s62 = sphi 0, %s64
    %s65 = sphi 0, %s62
    %s66 = sphi 0, %s65
    %s82 = sphi 0, %s66
    %s88 = sphi 0, %s90
    %s91 = sphi 0, %s88
    %s92 = sphi 0, %s91
    %s108 = sphi 0, %s92
    %s114 = sphi 0, %s116
    %s117 = sphi 0, %s114
    %s118 = sphi 0, %s117
    %s134 = sphi 0, %s118
  $region4: #{tpu_custom_call.1} parent=0 // loop_header_branch
    %13 = sbr.rel (%p11) target = $region8
  $region5: #{tpu_custom_call.1} parent=0 // loop_body
    %s15 = ssub.s32 %s10, 1
    %s16 = ssub.s32 %s10, 2
    %s23 = sadd.s32 1, %s18
    %p24 = scmp.ge.s32.totalorder %s23, 1
    %s25 = scalar_select %p24, 0, %s23
    %s26 = sadd.s32 1, %s17
    %s27 = scalar_select %p24, %s26, %s17
    %p28 = scmp.ge.s32.totalorder %s27, 2
    %s29 = scalar_select %p28, 0, %s27
    %s30 = sadd.s32 %s17, %s18
    %s31 = sadd.s32 %s29, %s25
    %s32 = ssub.s32 %s30, %s31
    %p33 = scmp.eq.s32.totalorder %s32, 0
    %s35 = sadd.s32 %s34, 1
    %s36 = scalar_select %p33, %s34, %s35
    %p39 = pneg %p33
    %p40 = scmp.eq.s32.totalorder %s10, 1
    %p41 = por %p39, %p40
    %p42 = scmp.ne.s32.totalorder %s34, %s37
    %p43 = scmp.eq.s32.totalorder %s10, 0
    %p44 = por %p42, %p43
    %p45 = scmp.ne.s32.totalorder %s34, %s37
    %p46 = scmp.eq.s32.totalorder %s15, 1
    %p47 = por %p45, %p46
    %p48 = scmp.ne.s32.totalorder %s37, %s38
    %p49 = scmp.eq.s32.totalorder %s15, 0
    %p50 = por %p48, %p49
    %p51 = scmp.ne.s32.totalorder %s37, %s38
    %p52 = scmp.eq.s32.totalorder %s16, 1
    %p53 = por %p51, %p52
    %p55 = scmp.ne.s32.totalorder %s38, %s54
    %p56 = scmp.eq.s32.totalorder %s16, 0
    %p57 = por %p55, %p56
    %s58 = sadd.s32 %s17, %s18
    %s59 = sadd.s32 %s29, %s25
    %s60 = ssub.s32 %s58, %s59
    %p61 = scmp.eq.s32.totalorder %s60, 0
    %s63 = sadd.s32 %s62, 1
    %s64 = scalar_select %p61, %s62, %s63
    %p67 = pneg %p61
    %p68 = scmp.eq.s32.totalorder %s10, 1
    %p69 = por %p67, %p68
    %p70 = scmp.ne.s32.totalorder %s62, %s65
    %p71 = scmp.eq.s32.totalorder %s10, 0
    %p72 = por %p70, %p71
    %p73 = scmp.ne.s32.totalorder %s62, %s65
    %p74 = scmp.eq.s32.totalorder %s15, 1
    %p75 = por %p73, %p74
    %p76 = scmp.ne.s32.totalorder %s65, %s66
    %p77 = scmp.eq.s32.totalorder %s15, 0
    %p78 = por %p76, %p77
    %p79 = scmp.ne.s32.totalorder %s65, %s66
    %p80 = scmp.eq.s32.totalorder %s16, 1
    %p81 = por %p79, %p80
    %p83 = scmp.ne.s32.totalorder %s66, %s82
    %p84 = scmp.eq.s32.totalorder %s16, 0
    %p85 = por %p83, %p84
    %s86 = ssub.s32 %s17, %s29
    %p87 = scmp.eq.s32.totalorder %s86, 0
    %s89 = sadd.s32 %s88, 1
    %s90 = scalar_select %p87, %s88, %s89
    %p93 = pneg %p87
    %p94 = scmp.eq.s32.totalorder %s10, 1
    %p95 = por %p93, %p94
    %p96 = scmp.ne.s32.totalorder %s88, %s91
    %p97 = scmp.eq.s32.totalorder %s10, 0
    %p98 = por %p96, %p97
    %p99 = scmp.ne.s32.totalorder %s88, %s91
    %p100 = scmp.eq.s32.totalorder %s15, 1
    %p101 = por %p99, %p100
    %p102 = scmp.ne.s32.totalorder %s91, %s92
    %p103 = scmp.eq.s32.totalorder %s15, 0
    %p104 = por %p102, %p103
    %p105 = scmp.ne.s32.totalorder %s91, %s92
    %p106 = scmp.eq.s32.totalorder %s16, 1
    %p107 = por %p105, %p106
    %p109 = scmp.ne.s32.totalorder %s92, %s108
    %p110 = scmp.eq.s32.totalorder %s16, 0
    %p111 = por %p109, %p110
    %s112 = ssub.s32 %s17, %s29
    %p113 = scmp.eq.s32.totalorder %s112, 0
    %s115 = sadd.s32 %s114, 1
    %s116 = scalar_select %p113, %s114, %s115
    %p119 = pneg %p113
    %p120 = scmp.eq.s32.totalorder %s10, 1
    %p121 = por %p119, %p120
    %p122 = scmp.ne.s32.totalorder %s114, %s117
    %p123 = scmp.eq.s32.totalorder %s10, 0
    %p124 = por %p122, %p123
    %p125 = scmp.ne.s32.totalorder %s114, %s117
    %p126 = scmp.eq.s32.totalorder %s15, 1
    %p127 = por %p125, %p126
    %p128 = scmp.ne.s32.totalorder %s117, %s118
    %p129 = scmp.eq.s32.totalorder %s15, 0
    %p130 = por %p128, %p129
    %p131 = scmp.ne.s32.totalorder %s117, %s118
    %p132 = scmp.eq.s32.totalorder %s16, 1
    %p133 = por %p131, %p132
    %p135 = scmp.ne.s32.totalorder %s118, %s134
    %p136 = scmp.eq.s32.totalorder %s16, 0
    %p137 = por %p135, %p136
    %p138 = scmp.le.s32.totalorder 1, %s10
    %p139 = scmp.lt.s32.totalorder %s10, 3
    %p140 = pnand %p138, %p139
    %p141 = pneg %p140
    // Predicated region
    $region9: #{tpu_custom_call.1} parent=5 // pred_check
      _
    $region10: #{tpu_custom_call.1} parent=5 // pred_check_branch
      %143 = sbr.rel (%p140) target = $region12
    $region11: #{tpu_custom_call.1} parent=5 // pred_region
      %s144 = ssub.s32 %s10, 1
    $region12: #{tpu_custom_call.1} parent=5 // pred_fallthru
      _
    %p145 = scmp.lt.s32.totalorder %s10, 2
    // Predicated region
    $region13: #{tpu_custom_call.1} parent=5 // pred_check
      %p146 = pneg %p145
    $region14: #{tpu_custom_call.1} parent=5 // pred_check_branch
      %148 = sbr.rel (%p146) target = $region16
    $region15: #{tpu_custom_call.1} parent=5 // pred_region
      // Predicated region
      $region17: #{tpu_custom_call.1} parent=15 // pred_check
        %p149 = pneg %p44
      $region18: #{tpu_custom_call.1} parent=15 // pred_check_branch
        %151 = sbr.rel (%p149) target = $region20
      $region19: #{tpu_custom_call.1} parent=15 // pred_region
        %s152 = sadd.s32 %s17, %s18
        %s153 = smul.u32 2, %s152
        %p154 = scmp.lt.s32.totalorder %s153, 3
        %s155 = scalar_select %p154, %s153, 3
        %s156 = smul.addr %s155, 8
        %s157 = scalar_lea.vmem %s0, %s156
        %s158 = sadd.s32 %s17, %s18
        %s159 = smul.u32 2, %s158
      $region20: #{tpu_custom_call.1} parent=15 // pred_fallthru
        _
      // Predicated region
      $region21: #{tpu_custom_call.1} parent=15 // pred_check
        %p160 = pneg %p72
      $region22: #{tpu_custom_call.1} parent=15 // pred_check_branch
        %162 = sbr.rel (%p160) target = $region24
      $region23: #{tpu_custom_call.1} parent=15 // pred_region
        %s163 = sadd.s32 %s17, %s18
        %s164 = smul.u32 2, %s163
        %p165 = scmp.lt.s32.totalorder %s164, 3
        %s166 = scalar_select %p165, %s164, 3
        %s167 = smul.addr %s166, 8
        %s168 = scalar_lea.vmem %s1, %s167
        %s169 = sadd.s32 %s17, %s18
        %s170 = smul.u32 2, %s169
      $region24: #{tpu_custom_call.1} parent=15 // pred_fallthru
        _
    $region16: #{tpu_custom_call.1} parent=5 // pred_fallthru
      _
    %p171 = scmp.le.s32.totalorder 1, %s10
    %p172 = scmp.lt.s32.totalorder %s10, 3
    %p173 = pnand %p171, %p172
    %p174 = pneg %p173
    // Predicated region
    $region25: #{tpu_custom_call.1} parent=5 // pred_check
      _
    $region26: #{tpu_custom_call.1} parent=5 // pred_check_branch
      %176 = sbr.rel (%p173) target = $region28
    $region27: #{tpu_custom_call.1} parent=5 // pred_region
      %s177 = ssub.s32 %s10, 1
      %s178 = sadd.s32 %s19, %s20
      %s179 = smul.u32 2, %s178
      %p180 = scmp.lt.s32.totalorder %s179, 3
      %s181 = scalar_select %p180, %s179, 3
      %s182 = smul.addr %s181, 8
      %s183 = scalar_lea.vmem %s0, %s182
      %p184 = pneg %p50
      %p185 = pneg %p47
      %s186 = sadd.s32 %s19, %s20
      %s187 = smul.u32 2, %s186
      %p188 = scmp.lt.s32.totalorder %s187, 3
      %s189 = scalar_select %p188, %s187, 3
      %s190 = smul.addr %s189, 8
      %s191 = scalar_lea.vmem %s1, %s190
      %p192 = pneg %p78
      %p193 = pneg %p75
      %p194 = pneg %p104
      %p195 = pneg %p101
      %p196 = scmp.lt.s32.totalorder %s19, 1
      %s197 = scalar_select %p196, %s19, 1
      %s198 = scalar_lea.vmem %s2, %s197
      %p199 = pneg %p130
      %p200 = pneg %p127
      %p201 = scmp.lt.s32.totalorder %s19, 1
      %s202 = scalar_select %p201, %s19, 1
      %s203 = scalar_lea.vmem %s3, %s202
      %s204 = sadd.s32 %s19, %s20
      %s205 = smul.u32 2, %s204
      %p206 = scmp.lt.s32.totalorder %s205, 3
      %s207 = scalar_select %p206, %s205, 3
      %s208 = smul.addr %s207, 8
      %s209 = scalar_lea.vmem %s0, %s208
      %s210 = sadd.s32 %s19, %s20
      %s211 = smul.u32 2, %s210
      %s212 = sadd.s32 %s19, %s20
      %s213 = smul.u32 2, %s212
      %p214 = scmp.lt.s32.totalorder %s213, 3
      %s215 = scalar_select %p214, %s213, 3
      %s216 = smul.addr %s215, 8
      %s217 = scalar_lea.vmem %s1, %s216
      %s218 = sadd.s32 %s19, %s20
      %s219 = smul.u32 2, %s218
      %p220 = scmp.lt.s32.totalorder %s19, 1
      %s221 = scalar_select %p220, %s19, 1
      %s222 = scalar_lea.vmem %s2, %s221
      %p223 = scmp.lt.s32.totalorder %s19, 1
      %s224 = scalar_select %p223, %s19, 1
      %s225 = scalar_lea.vmem %s3, %s224
      %p226 = scmp.eq.s32.totalorder %s20, 0
      // Predicated region
      $region29: #{tpu_custom_call.1} parent=27 // pred_check
        %p227 = pneg %p226
      $region30: #{tpu_custom_call.1} parent=27 // pred_check_branch
        %229 = sbr.rel (%p227) target = $region32
      $region31: #{tpu_custom_call.1} parent=27 // pred_region
        %vm230 = vcmask 0
        %231 = vst.msk [vmem:[%s222] sm:$0x1] %vm230, 0.0
        %232 = vst.msk [vmem:[%s225] sm:$0x1] %vm230, 0.0
      $region32: #{tpu_custom_call.1} parent=27 // pred_fallthru
        _
      %v233 = vld [vmem:[%s209] sm:$0xff]
      %v234 = vld [vmem:[%s209 + $0x8] sm:$0xff]
      %v235 = vld [vmem:[%s217] sm:$0xff]
      %v236 = vld [vmem:[%s217 + $0x8] sm:$0xff]
      %vm237 = vcmask 261120
      %v238 = vsel %vm237, %v233, -inf
      %239 = vmax.xlane.f32.xlu0 %v238
      %v240 = vpop.xlane.xlu0 %239
      %v241 = vsel %vm237, %v234, -inf
      %242 = vmax.xlane.f32.xlu0 %v241
      %v243 = vpop.xlane.xlu0 %242
      %v244 = vsub.f32 %v233, %v240
      %v245 = vsub.f32 %v234, %v243
      %v246 = vmul.f32 %v244, 1.442695
      %v247 = vpow.pop %v246
      %v248 = vmul.f32 %v245, 1.442695
      %v249 = vpow.pop %v248
      %v250 = vsel %vm237, %v247, 0.0
      %251 = vadd.xlane.f32.xlu0 %v250
      %v252 = vpop.xlane.xlu0 %251
      %v253 = vsel %vm237, %v249, 0.0
      %254 = vadd.xlane.f32.xlu0 %v253
      %v255 = vpop.xlane.xlu0 %254
      %v256 = vlaneseq
      %v257 = vand.u32 %v256, 127
      %258 = vset.pattern.permute.xlu0 0
      %259 = vperm.xlu0 %258, %v235
      %v260 = vpop.permute.xlu0 %259
      %261 = vset.pattern.permute.xlu0 0
      %262 = vperm.xlu0 %261, %v236
      %v263 = vpop.permute.xlu0 %262
      %vm264 = vcmp.eq.s32.totalorder %v257, %v260
      %vm265 = vcmp.eq.s32.totalorder %v257, %v263
      %v266 = vsel %vm264, %v244, 0.0
      %v267 = vsel %vm265, %v245, 0.0
      %v268 = vsel %vm237, %v266, 0.0
      %269 = vadd.xlane.f32.xlu0 %v268
      %v270 = vpop.xlane.xlu0 %269
      %v271 = vsel %vm237, %v267, 0.0
      %272 = vadd.xlane.f32.xlu0 %v271
      %v273 = vpop.xlane.xlu0 %272
      %vm274 = vcmp.ge.s32.totalorder %v235, 0
      %vm275 = vcmp.ge.s32.totalorder %v236, 0
      %v276 = vlog2.pop %v252
      %v277 = vmul.f32 %v276, 0.6931472
      %v278 = vlog2.pop %v255
      %v279 = vmul.f32 %v278, 0.6931472
      %v280 = vsub.f32 %v277, %v270
      %v281 = vsub.f32 %v279, %v273
      %v282 = vld [vmem:[%s222] sm:$0x1]
      %v283 = vsel %vm274, %v280, 0.0
      %v284 = vsel %vm275, %v281, 0.0
      %vm285 = vcmask 7168
      %v286 = vsel %vm285, %v283, 0.0
      %v287 = vsel %vm285, %v284, 0.0
      %v288 = vadd.f32 %v286, %v287
      %289 = vadd.xlane.f32.xlu0 %v288
      %v290 = vpop.xlane.xlu0 %289
      %v291 = vrot.slane %v290, 4
      %v292 = vadd.f32 %v290, %v291
      %v293 = vrot.slane %v292, 2
      %v294 = vadd.f32 %v292, %v293
      %v295 = vrot.slane %v294, 1
      %v296 = vadd.f32 %v294, %v295
      %s297 = vtos %v296
      %v298 = vstv %s297
      %v299 = vadd.f32 %v282, %v298
      %vm300 = vcmask 0
      %301 = vst.msk [vmem:[%s222] sm:$0x1] %vm300, %v299
      %v302 = vld [vmem:[%s225] sm:$0x1]
      %v303 = vsel %vm274, 1, 0
      %v304 = vsel %vm275, 1, 0
      %v305 = vcvt.s32.f32 %v303
      %v306 = vcvt.s32.f32 %v304
      %v307 = vsel %vm285, %v305, 0.0
      %v308 = vsel %vm285, %v306, 0.0
      %v309 = vadd.f32 %v307, %v308
      %310 = vadd.xlane.f32.xlu0 %v309
      %v311 = vpop.xlane.xlu0 %310
      %v312 = vrot.slane %v311, 4
      %v313 = vadd.f32 %v311, %v312
      %v314 = vrot.slane %v313, 2
      %v315 = vadd.f32 %v313, %v314
      %v316 = vrot.slane %v315, 1
      %v317 = vadd.f32 %v315, %v316
      %s318 = vtos %v317
      %v319 = vstv %s318
      %v320 = vadd.f32 %v302, %v319
      %321 = vst.msk [vmem:[%s225] sm:$0x1] %vm300, %v320
      %p322 = scmp.lt.s32.totalorder %s19, 1
      %s323 = scalar_select %p322, %s19, 1
      %s324 = scalar_lea.vmem %s2, %s323
      %p325 = scmp.lt.s32.totalorder %s19, 1
      %s326 = scalar_select %p325, %s19, 1
      %s327 = scalar_lea.vmem %s3, %s326
      // Predicated region
      $region33: #{tpu_custom_call.1} parent=27 // pred_check
        %p328 = pneg %p101
      $region34: #{tpu_custom_call.1} parent=27 // pred_check_branch
        %330 = sbr.rel (%p328) target = $region36
      $region35: #{tpu_custom_call.1} parent=27 // pred_region
        _
      $region36: #{tpu_custom_call.1} parent=27 // pred_fallthru
        _
      // Predicated region
      $region37: #{tpu_custom_call.1} parent=27 // pred_check
        %p331 = pneg %p127
      $region38: #{tpu_custom_call.1} parent=27 // pred_check_branch
        %333 = sbr.rel (%p331) target = $region40
      $region39: #{tpu_custom_call.1} parent=27 // pred_region
        _
      $region40: #{tpu_custom_call.1} parent=27 // pred_fallthru
        _
    $region28: #{tpu_custom_call.1} parent=5 // pred_fallthru
      _
    %p334 = scmp.le.s32.totalorder 2, %s10
    // Predicated region
    $region41: #{tpu_custom_call.1} parent=5 // pred_check
      %p335 = pneg %p334
    $region42: #{tpu_custom_call.1} parent=5 // pred_check_branch
      %337 = sbr.rel (%p335) target = $region44
    $region43: #{tpu_custom_call.1} parent=5 // pred_region
      %s338 = ssub.s32 %s10, 2
      // Predicated region
      $region45: #{tpu_custom_call.1} parent=43 // pred_check
        %p339 = pneg %p107
      $region46: #{tpu_custom_call.1} parent=43 // pred_check_branch
        %341 = sbr.rel (%p339) target = $region48
      $region47: #{tpu_custom_call.1} parent=43 // pred_region
        %p342 = scmp.lt.s32.totalorder %s21, 1
        %s343 = scalar_select %p342, %s21, 1
        %s344 = scalar_lea.vmem %s2, %s343
      $region48: #{tpu_custom_call.1} parent=43 // pred_fallthru
        _
      // Predicated region
      $region49: #{tpu_custom_call.1} parent=43 // pred_check
        %p345 = pneg %p133
      $region50: #{tpu_custom_call.1} parent=43 // pred_check_branch
        %347 = sbr.rel (%p345) target = $region52
      $region51: #{tpu_custom_call.1} parent=43 // pred_region
        %p348 = scmp.lt.s32.totalorder %s21, 1
        %s349 = scalar_select %p348, %s21, 1
        %s350 = scalar_lea.vmem %s3, %s349
      $region52: #{tpu_custom_call.1} parent=43 // pred_fallthru
        _
    $region44: #{tpu_custom_call.1} parent=5 // pred_fallthru
      _
  $region6: #{tpu_custom_call.1} parent=0 // loop_footer
    %s14 = sadd.s32 1, %s10
  $region7: #{tpu_custom_call.1} parent=0 // loop_footer_branch
    %9 = sbr.rel target = $region3
  $region8: #{tpu_custom_call.1} parent=0 // loop_exit
    _

</llo_original>
